<compile_context>
chip_gen: v7x
topology: tpu7x:2x2x1
jax: 0.10.0
libtpu: 0.0.40
codegen_flags: <defaults>
</compile_context>

<pallas_src>
import functools

import jax
import jax.numpy as jnp
import numpy as np
from jax.experimental import pallas as pl
from jax.experimental.pallas import tpu as pltpu


def _round_up(x: int, m: int) -> int:
    return ((x + m - 1) // m) * m


def _choose_tile_i(n: int) -> int:
    """Rows of the i tile per grid step; the j side stays fully VMEM-resident."""
    half = _round_up(max((n + 1) // 2, 1), 8)
    tile = min(256, half)
    # keep the (tile_i, n_pad) accumulator / per-step blocks comfortably inside VMEM
    n_pad_guess = _round_up(n, 2 * tile)
    budget_rows = (4 << 20) // (4 * n_pad_guess)       # ~4 MiB f32 budget for the acc
    budget_rows = max(8, (budget_rows // 8) * 8)
    return min(tile, budget_rows)


# --------------------------------------------------------------------------------------
# Fused kernel: p_bar / residuals + tiled MMD-KCE accumulation.
#   grid = (2, bph): axis 0 "parallel" (per-core partials), axis 1 "arbitrary" (i tiles).
# --------------------------------------------------------------------------------------
def _mmd_fused_kernel(p_i_ref, w_i_ref, y1h_i_ref,          # i-tiled, original layout
                      p_t_ref, w_t_ref, y1h_t_ref,          # full-resident, lane-dense
                      out_ref,                               # (1, 8, 128) per-core partial
                      pbar_t_ref, diff_t_ref, acc_ref,       # VMEM scratch
                      *, inv_two_bw_sq, inv_n_sq, n_members, n_classes):
    i = pl.program_id(1)

    # ---- once per core: lane-dense (K, N_pad) p_bar / residual rows; zero accumulator.
    @pl.when(i == 0)
    def _init():
        p_t = p_t_ref[...]                                   # (M, K, Npad)
        w_t = w_t_ref[...]                                   # (M, Npad)
        pbar_t = w_t[0:1, :] * p_t[0]                        # (K, Npad)
        for m in range(1, n_members):
            pbar_t = pbar_t + w_t[m:m + 1, :] * p_t[m]
        pbar_t_ref[...] = pbar_t
        diff_t_ref[...] = y1h_t_ref[...] - pbar_t
        acc_ref[...] = jnp.zeros_like(acc_ref)

    # ---- per i tile: p_bar / residual columns (each element computed exactly once).
    p_i = p_i_ref[...]                                       # (TI, M, K)
    w_i = w_i_ref[...]                                       # (TI, M)
    pbar_i = w_i[:, 0:1] * p_i[:, 0, :]                      # (TI, K)
    for m in range(1, n_members):
        pbar_i = pbar_i + w_i[:, m:m + 1] * p_i[:, m, :]
    diff_i = y1h_i_ref[...] - pbar_i                         # (TI, K)

    pbar_t = pbar_t_ref[...]                                 # (K, Npad)
    diff_t = diff_t_ref[...]                                 # (K, Npad)

    # ---- pairwise RBF * residual Gram via VPU broadcasts (no MXU: contraction dim is K).
    sqd = None
    gram = None
    for k in range(n_classes):
        dp = pbar_i[:, k:k + 1] - pbar_t[k:k + 1, :]         # (TI, Npad)
        dg = diff_i[:, k:k + 1] * diff_t[k:k + 1, :]         # (TI, Npad)
        sqd = dp * dp if sqd is None else sqd + dp * dp
        gram = dg if gram is None else gram + dg

    acc_ref[...] += jnp.exp(sqd * (-inv_two_bw_sq)) * gram   # elementwise; reduce deferred

    # ---- last i tile: single cross-lane reduce, scale, lane-dense broadcast store.
    @pl.when(i == pl.num_programs(1) - 1)
    def _fini():
        total = jnp.sum(acc_ref[...]) * inv_n_sq
        out_ref[...] = jnp.broadcast_to(total, out_ref.shape).astype(out_ref.dtype)


def mmd_loss_pallas(p_preds, weights_l, y, bw, *, lambda_bce=0.0):
    p_preds = jnp.asarray(p_preds, jnp.float32)
    weights_l = jnp.asarray(weights_l, jnp.float32)
    N, M, K = p_preds.shape

    tile_i = _choose_tile_i(N)
    n_pad = _round_up(N, 2 * tile_i)
    bph = n_pad // (2 * tile_i)                              # i blocks per core-half

    # ---- wrapper-side layout plumbing (zero-padding + lane-dense transposes) ----
    y1h = jax.nn.one_hot(y, K, dtype=jnp.float32)            # (N, K)
    pad = n_pad - N
    p_pad = jnp.pad(p_preds, ((0, pad), (0, 0), (0, 0)))
    w_pad = jnp.pad(weights_l, ((0, pad), (0, 0)))
    y1h_pad = jnp.pad(y1h, ((0, pad), (0, 0)))
    p_t = jnp.transpose(p_pad, (1, 2, 0))                    # (M, K, Npad)  lane-dense
    w_t = jnp.transpose(w_pad, (1, 0))                       # (M, Npad)
    y1h_t = jnp.transpose(y1h_pad, (1, 0))                   # (K, Npad)

    kern = functools.partial(
        _mmd_fused_kernel,
        inv_two_bw_sq=float(1.0 / (2.0 * bw * bw)),
        inv_n_sq=float(1.0 / (N * N)),
        n_members=M, n_classes=K)

    # explicit scoped-VMEM budget: resident lane-dense inputs (double-buffered by the
    # pipeline even at a constant block index) + streamed i tiles + scratch, with headroom.
    bytes_resident = 4 * n_pad * (M * K + M + K) * 2
    bytes_stream = 4 * tile_i * (M * K + M + K) * 2
    bytes_scratch = 4 * (2 * K * n_pad + tile_i * n_pad)
    vmem_limit = int(min(100 << 20,
                         max(32 << 20,
                             int(1.5 * (bytes_resident + bytes_stream + bytes_scratch)))))

    partials = pl.pallas_call(
        kern,
        out_shape=jax.ShapeDtypeStruct((2, 8, 128), jnp.float32),
        grid_spec=pltpu.PrefetchScalarGridSpec(
            num_scalar_prefetch=0,
            grid=(2, bph),
            in_specs=[
                # i-tiled original layout (streamed once over the grid)
                pl.BlockSpec((tile_i, M, K), lambda c, i: (c * bph + i, 0, 0)),
                pl.BlockSpec((tile_i, M),    lambda c, i: (c * bph + i, 0)),
                pl.BlockSpec((tile_i, K),    lambda c, i: (c * bph + i, 0)),
                # full-resident, lane-dense j-side sources (DMA'd once, constant index)
                pl.BlockSpec((M, K, n_pad),  lambda c, i: (0, 0, 0)),
                pl.BlockSpec((M, n_pad),     lambda c, i: (0, 0)),
                pl.BlockSpec((K, n_pad),     lambda c, i: (0, 0)),
            ],
            out_specs=pl.BlockSpec((1, 8, 128), lambda c, i: (c, 0, 0)),
            scratch_shapes=[
                pltpu.VMEM((K, n_pad), jnp.float32),          # p_bar rows (lane-dense)
                pltpu.VMEM((K, n_pad), jnp.float32),          # residual rows
                pltpu.VMEM((tile_i, n_pad), jnp.float32),     # elementwise accumulator
            ]),
        compiler_params=pltpu.CompilerParams(
            dimension_semantics=("parallel", "arbitrary"),
            vmem_limit_bytes=vmem_limit),
    )(p_pad, w_pad, y1h_pad, p_t, w_t, y1h_t)

    loss = partials[0, 0, 0] + partials[1, 0, 0]

    if lambda_bce > 0:
        # BCE branch (inactive at the module default lambda_bce=0.0); plain-JAX glue.
        pbar = jnp.sum(weights_l[:, :, None] * p_preds, axis=1)
        eps = 1e-7
        p1 = jnp.clip(pbar[:, 1], eps, 1.0 - eps)
        yf = y.astype(jnp.float32)
        bce = -jnp.mean(yf * jnp.log(p1) + (1.0 - yf) * jnp.log(1.0 - p1))
        loss = loss + lambda_bce * bce
    return loss


# --------------------------------------------------------------------------------------
# Module wrapper (mirrors MMDLoss.__init__/forward)
# --------------------------------------------------------------------------------------
class MMDLossPallas:
    def __init__(self, bw: float, lambda_bce: float = 0.0, lambda_cal: float = 1.0):
        self.bw = float(bw)
        self.lambda_bce = float(lambda_bce)
        # stored like the original (CalibrationLossBinary.lambda_cal) but unused in forward
        self.lambda_cal = float(lambda_cal)

    def __call__(self, p_preds, weights_l, y):
        return mmd_loss_pallas(p_preds, weights_l, y, self.bw, lambda_bce=self.lambda_bce)


# --------------------------------------------------------------------------------------
# Pure-JAX reference for verification
# --------------------------------------------------------------------------------------
def mmd_loss_ref(p_preds, weights_l, y, bw):
    pbar = jnp.sum(weights_l[:, :, None] * p_preds, axis=1)
    y1h = jax.nn.one_hot(y, pbar.shape[1], dtype=jnp.float32)
    diff = y1h - pbar
    sqd = jnp.sum((pbar[:, None, :] - pbar[None, :, :]) ** 2, axis=-1)
    kmat = jnp.exp(-sqd / (2.0 * bw * bw))
    gmat = diff @ diff.T
    return jnp.sum(kmat * gmat) / (pbar.shape[0] ** 2)


if __name__ == "__main__":
    N, M, K = 64, 4, 2   # instances, ensemble members, binary classes
    bw = 0.5

    key = jax.random.PRNGKey(0)
    k1, k2, k3 = jax.random.split(key, 3)
    p_preds = jax.nn.softmax(jax.random.normal(k1, (N, M, K), dtype=jnp.float32), axis=-1)
    weights_l = jax.nn.softmax(jax.random.normal(k2, (N, M), dtype=jnp.float32), axis=-1)
    y = jax.random.bernoulli(k3, 0.5, (N,)).astype(jnp.int32)

    loss_fn = MMDLossPallas(bw=bw, lambda_bce=0.0)
    loss = jax.block_until_ready(loss_fn(p_preds, weights_l, y))
    ref = jax.block_until_ready(mmd_loss_ref(p_preds, weights_l, y, bw))

    assert np.isfinite(float(loss))
    np.testing.assert_allclose(np.asarray(loss), np.asarray(ref), rtol=1e-5, atol=1e-6)
    print("KERNEL_OK")
</pallas_src>

<mosaic_0001>
module attributes {stable_mosaic.version = 11 : i64} {
  func.func @_mmd_fused_kernel(%arg0: i32, %arg1: i32, %arg2: memref<32x4x2xf32, #tpu.memory_space<vmem>>, %arg3: memref<32x4xf32, #tpu.memory_space<vmem>>, %arg4: memref<32x2xf32, #tpu.memory_space<vmem>>, %arg5: memref<4x2x64xf32, #tpu.memory_space<vmem>>, %arg6: memref<4x64xf32, #tpu.memory_space<vmem>>, %arg7: memref<2x64xf32, #tpu.memory_space<vmem>>, %arg8: memref<1x8x128xf32, #tpu.memory_space<vmem>>, %arg9: memref<2x64xf32, #tpu.memory_space<vmem>>, %arg10: memref<2x64xf32, #tpu.memory_space<vmem>>, %arg11: memref<32x64xf32, #tpu.memory_space<vmem>>) attributes {dimension_semantics = [#tpu.dimension_semantics<parallel>, #tpu.dimension_semantics<arbitrary>], iteration_bounds = array<i64: 2, 1>, scalar_prefetch = 0 : i64, scratch_operands = 3 : i64, tpu.core_type = #tpu.core_type<tc>, window_params = [{transform_indices = @transform_0, window_bounds = array<i64: 32, 4, 2>}, {transform_indices = @transform_1, window_bounds = array<i64: 32, 4>}, {transform_indices = @transform_2, window_bounds = array<i64: 32, 2>}, {pipeline_mode = #tpu.pipeline_mode<synchronous>, transform_indices = @transform_3, window_bounds = array<i64: 4, 2, 64>}, {pipeline_mode = #tpu.pipeline_mode<synchronous>, transform_indices = @transform_4, window_bounds = array<i64: 4, 64>}, {pipeline_mode = #tpu.pipeline_mode<synchronous>, transform_indices = @transform_5, window_bounds = array<i64: 2, 64>}, {transform_indices = @transform_6, window_bounds = array<i64: 1, 8, 128>}]} {
    %c0_i32 = arith.constant 0 : i32
    %0 = arith.cmpi eq, %arg1, %c0_i32 : i32
    %1 = arith.extui %0 : i1 to i32
    %c0_i32_0 = arith.constant 0 : i32
    %2 = arith.cmpi ne, %1, %c0_i32_0 : i32
    scf.if %2 {
      %c0_17 = arith.constant 0 : index
      %c0_18 = arith.constant 0 : index
      %c0_19 = arith.constant 0 : index
      %66 = vector.load %arg5[%c0_17, %c0_18, %c0_19] : memref<4x2x64xf32, #tpu.memory_space<vmem>>, vector<4x2x64xf32>
      %c0_20 = arith.constant 0 : index
      %c0_21 = arith.constant 0 : index
      %67 = vector.load %arg6[%c0_20, %c0_21] : memref<4x64xf32, #tpu.memory_space<vmem>>, vector<4x64xf32>
      %68 = vector.extract_strided_slice %67 {offsets = [0, 0], sizes = [1, 64], strides = [1, 1]} : vector<4x64xf32> to vector<1x64xf32>
      %69 = vector.extract_strided_slice %66 {offsets = [0, 0, 0], sizes = [1, 2, 64], strides = [1, 1, 1]} : vector<4x2x64xf32> to vector<1x2x64xf32>
      %70 = vector.shape_cast %69 : vector<1x2x64xf32> to vector<2x64xf32>
      %71 = vector.broadcast %68 : vector<1x64xf32> to vector<2x64xf32>
      %72 = arith.mulf %71, %70 : vector<2x64xf32>
      %73 = vector.extract_strided_slice %67 {offsets = [1, 0], sizes = [1, 64], strides = [1, 1]} : vector<4x64xf32> to vector<1x64xf32>
      %74 = vector.extract_strided_slice %66 {offsets = [1, 0, 0], sizes = [1, 2, 64], strides = [1, 1, 1]} : vector<4x2x64xf32> to vector<1x2x64xf32>
      %75 = vector.shape_cast %74 : vector<1x2x64xf32> to vector<2x64xf32>
      %76 = vector.broadcast %73 : vector<1x64xf32> to vector<2x64xf32>
      %77 = arith.mulf %76, %75 : vector<2x64xf32>
      %78 = arith.addf %72, %77 : vector<2x64xf32>
      %79 = vector.extract_strided_slice %67 {offsets = [2, 0], sizes = [1, 64], strides = [1, 1]} : vector<4x64xf32> to vector<1x64xf32>
      %80 = vector.extract_strided_slice %66 {offsets = [2, 0, 0], sizes = [1, 2, 64], strides = [1, 1, 1]} : vector<4x2x64xf32> to vector<1x2x64xf32>
      %81 = vector.shape_cast %80 : vector<1x2x64xf32> to vector<2x64xf32>
      %82 = vector.broadcast %79 : vector<1x64xf32> to vector<2x64xf32>
      %83 = arith.mulf %82, %81 : vector<2x64xf32>
      %84 = arith.addf %78, %83 : vector<2x64xf32>
      %85 = vector.extract_strided_slice %67 {offsets = [3, 0], sizes = [1, 64], strides = [1, 1]} : vector<4x64xf32> to vector<1x64xf32>
      %86 = vector.extract_strided_slice %66 {offsets = [3, 0, 0], sizes = [1, 2, 64], strides = [1, 1, 1]} : vector<4x2x64xf32> to vector<1x2x64xf32>
      %87 = vector.shape_cast %86 : vector<1x2x64xf32> to vector<2x64xf32>
      %88 = vector.broadcast %85 : vector<1x64xf32> to vector<2x64xf32>
      %89 = arith.mulf %88, %87 : vector<2x64xf32>
      %90 = arith.addf %84, %89 : vector<2x64xf32>
      %c0_22 = arith.constant 0 : index
      %c0_23 = arith.constant 0 : index
      %91 = vector.load %arg9[%c0_22, %c0_23] : memref<2x64xf32, #tpu.memory_space<vmem>>, vector<2x64xf32>
      tpu.vector_store %arg9[%c0_22, %c0_23], %90 {strides = array<i32>} : memref<2x64xf32, #tpu.memory_space<vmem>>, vector<2x64xf32>,
      %c0_24 = arith.constant 0 : index
      %c0_25 = arith.constant 0 : index
      %92 = vector.load %arg7[%c0_24, %c0_25] : memref<2x64xf32, #tpu.memory_space<vmem>>, vector<2x64xf32>
      %93 = arith.subf %92, %90 : vector<2x64xf32>
      %c0_26 = arith.constant 0 : index
      %c0_27 = arith.constant 0 : index
      %94 = vector.load %arg10[%c0_26, %c0_27] : memref<2x64xf32, #tpu.memory_space<vmem>>, vector<2x64xf32>
      tpu.vector_store %arg10[%c0_26, %c0_27], %93 {strides = array<i32>} : memref<2x64xf32, #tpu.memory_space<vmem>>, vector<2x64xf32>,
      %cst_28 = arith.constant 0.000000e+00 : f32
      %95 = vector.broadcast %cst_28 : f32 to vector<32x64xf32>
      %c0_29 = arith.constant 0 : index
      %c0_30 = arith.constant 0 : index
      %96 = vector.load %arg11[%c0_29, %c0_30] : memref<32x64xf32, #tpu.memory_space<vmem>>, vector<32x64xf32>
      tpu.vector_store %arg11[%c0_29, %c0_30], %95 {strides = array<i32>} : memref<32x64xf32, #tpu.memory_space<vmem>>, vector<32x64xf32>,
    } else {
    }
    %c0 = arith.constant 0 : index
    %c0_1 = arith.constant 0 : index
    %c0_2 = arith.constant 0 : index
    %3 = vector.load %arg2[%c0, %c0_1, %c0_2] : memref<32x4x2xf32, #tpu.memory_space<vmem>>, vector<32x4x2xf32>
    %c0_3 = arith.constant 0 : index
    %c0_4 = arith.constant 0 : index
    %4 = vector.load %arg3[%c0_3, %c0_4] : memref<32x4xf32, #tpu.memory_space<vmem>>, vector<32x4xf32>
    %5 = vector.extract_strided_slice %4 {offsets = [0, 0], sizes = [32, 1], strides = [1, 1]} : vector<32x4xf32> to vector<32x1xf32>
    %6 = vector.extract_strided_slice %3 {offsets = [0, 0, 0], sizes = [32, 1, 2], strides = [1, 1, 1]} : vector<32x4x2xf32> to vector<32x1x2xf32>
    %7 = vector.shape_cast %6 : vector<32x1x2xf32> to vector<32x2xf32>
    %8 = vector.broadcast %5 : vector<32x1xf32> to vector<32x2xf32>
    %9 = arith.mulf %8, %7 : vector<32x2xf32>
    %10 = vector.extract_strided_slice %4 {offsets = [0, 1], sizes = [32, 1], strides = [1, 1]} : vector<32x4xf32> to vector<32x1xf32>
    %11 = vector.extract_strided_slice %3 {offsets = [0, 1, 0], sizes = [32, 1, 2], strides = [1, 1, 1]} : vector<32x4x2xf32> to vector<32x1x2xf32>
    %12 = vector.shape_cast %11 : vector<32x1x2xf32> to vector<32x2xf32>
    %13 = vector.broadcast %10 : vector<32x1xf32> to vector<32x2xf32>
    %14 = arith.mulf %13, %12 : vector<32x2xf32>
    %15 = arith.addf %9, %14 : vector<32x2xf32>
    %16 = vector.extract_strided_slice %4 {offsets = [0, 2], sizes = [32, 1], strides = [1, 1]} : vector<32x4xf32> to vector<32x1xf32>
    %17 = vector.extract_strided_slice %3 {offsets = [0, 2, 0], sizes = [32, 1, 2], strides = [1, 1, 1]} : vector<32x4x2xf32> to vector<32x1x2xf32>
    %18 = vector.shape_cast %17 : vector<32x1x2xf32> to vector<32x2xf32>
    %19 = vector.broadcast %16 : vector<32x1xf32> to vector<32x2xf32>
    %20 = arith.mulf %19, %18 : vector<32x2xf32>
    %21 = arith.addf %15, %20 : vector<32x2xf32>
    %22 = vector.extract_strided_slice %4 {offsets = [0, 3], sizes = [32, 1], strides = [1, 1]} : vector<32x4xf32> to vector<32x1xf32>
    %23 = vector.extract_strided_slice %3 {offsets = [0, 3, 0], sizes = [32, 1, 2], strides = [1, 1, 1]} : vector<32x4x2xf32> to vector<32x1x2xf32>
    %24 = vector.shape_cast %23 : vector<32x1x2xf32> to vector<32x2xf32>
    %25 = vector.broadcast %22 : vector<32x1xf32> to vector<32x2xf32>
    %26 = arith.mulf %25, %24 : vector<32x2xf32>
    %27 = arith.addf %21, %26 : vector<32x2xf32>
    %c0_5 = arith.constant 0 : index
    %c0_6 = arith.constant 0 : index
    %28 = vector.load %arg4[%c0_5, %c0_6] : memref<32x2xf32, #tpu.memory_space<vmem>>, vector<32x2xf32>
    %29 = arith.subf %28, %27 : vector<32x2xf32>
    %c0_7 = arith.constant 0 : index
    %c0_8 = arith.constant 0 : index
    %30 = vector.load %arg9[%c0_7, %c0_8] : memref<2x64xf32, #tpu.memory_space<vmem>>, vector<2x64xf32>
    %c0_9 = arith.constant 0 : index
    %c0_10 = arith.constant 0 : index
    %31 = vector.load %arg10[%c0_9, %c0_10] : memref<2x64xf32, #tpu.memory_space<vmem>>, vector<2x64xf32>
    %32 = vector.extract_strided_slice %27 {offsets = [0, 0], sizes = [32, 1], strides = [1, 1]} : vector<32x2xf32> to vector<32x1xf32>
    %33 = vector.extract_strided_slice %30 {offsets = [0, 0], sizes = [1, 64], strides = [1, 1]} : vector<2x64xf32> to vector<1x64xf32>
    %34 = vector.broadcast %32 : vector<32x1xf32> to vector<32x64xf32>
    %35 = vector.broadcast %33 : vector<1x64xf32> to vector<32x64xf32>
    %36 = arith.subf %34, %35 : vector<32x64xf32>
    %37 = vector.extract_strided_slice %29 {offsets = [0, 0], sizes = [32, 1], strides = [1, 1]} : vector<32x2xf32> to vector<32x1xf32>
    %38 = vector.extract_strided_slice %31 {offsets = [0, 0], sizes = [1, 64], strides = [1, 1]} : vector<2x64xf32> to vector<1x64xf32>
    %39 = vector.broadcast %37 : vector<32x1xf32> to vector<32x64xf32>
    %40 = vector.broadcast %38 : vector<1x64xf32> to vector<32x64xf32>
    %41 = arith.mulf %39, %40 : vector<32x64xf32>
    %42 = arith.mulf %36, %36 : vector<32x64xf32>
    %43 = vector.extract_strided_slice %27 {offsets = [0, 1], sizes = [32, 1], strides = [1, 1]} : vector<32x2xf32> to vector<32x1xf32>
    %44 = vector.extract_strided_slice %30 {offsets = [1, 0], sizes = [1, 64], strides = [1, 1]} : vector<2x64xf32> to vector<1x64xf32>
    %45 = vector.broadcast %43 : vector<32x1xf32> to vector<32x64xf32>
    %46 = vector.broadcast %44 : vector<1x64xf32> to vector<32x64xf32>
    %47 = arith.subf %45, %46 : vector<32x64xf32>
    %48 = vector.extract_strided_slice %29 {offsets = [0, 1], sizes = [32, 1], strides = [1, 1]} : vector<32x2xf32> to vector<32x1xf32>
    %49 = vector.extract_strided_slice %31 {offsets = [1, 0], sizes = [1, 64], strides = [1, 1]} : vector<2x64xf32> to vector<1x64xf32>
    %50 = vector.broadcast %48 : vector<32x1xf32> to vector<32x64xf32>
    %51 = vector.broadcast %49 : vector<1x64xf32> to vector<32x64xf32>
    %52 = arith.mulf %50, %51 : vector<32x64xf32>
    %53 = arith.mulf %47, %47 : vector<32x64xf32>
    %54 = arith.addf %42, %53 : vector<32x64xf32>
    %55 = arith.addf %41, %52 : vector<32x64xf32>
    %c0_11 = arith.constant 0 : index
    %c0_12 = arith.constant 0 : index
    %56 = vector.load %arg11[%c0_11, %c0_12] : memref<32x64xf32, #tpu.memory_space<vmem>>, vector<32x64xf32>
    %cst = arith.constant -2.000000e+00 : f32
    %57 = vector.broadcast %cst : f32 to vector<32x64xf32>
    %58 = arith.mulf %54, %57 : vector<32x64xf32>
    %59 = math.exp %58 : vector<32x64xf32>
    %60 = arith.mulf %59, %55 : vector<32x64xf32>
    %61 = arith.addf %56, %60 : vector<32x64xf32>
    %c0_13 = arith.constant 0 : index
    %c0_14 = arith.constant 0 : index
    %62 = vector.load %arg11[%c0_13, %c0_14] : memref<32x64xf32, #tpu.memory_space<vmem>>, vector<32x64xf32>
    tpu.vector_store %arg11[%c0_13, %c0_14], %61 {strides = array<i32>} : memref<32x64xf32, #tpu.memory_space<vmem>>, vector<32x64xf32>,
    %c0_i32_15 = arith.constant 0 : i32
    %63 = arith.cmpi eq, %arg1, %c0_i32_15 : i32
    %64 = arith.extui %63 : i1 to i32
    %c0_i32_16 = arith.constant 0 : i32
    %65 = arith.cmpi ne, %64, %c0_i32_16 : i32
    scf.if %65 {
      %c0_17 = arith.constant 0 : index
      %c0_18 = arith.constant 0 : index
      %66 = vector.load %arg11[%c0_17, %c0_18] : memref<32x64xf32, #tpu.memory_space<vmem>>, vector<32x64xf32>
      %67 = vector.shape_cast %66 : vector<32x64xf32> to vector<1x32x64xf32>
      %cst_19 = arith.constant dense<0.000000e+00> : vector<1xf32>
      %68 = vector.multi_reduction <add>, %67, %cst_19 [1, 2] : vector<1x32x64xf32> to vector<1xf32>
      %69 = vector.shape_cast %68 : vector<1xf32> to vector<1x1x1xf32>
      %70 = vector.extract %69[0, 0, 0] : f32 from vector<1x1x1xf32>
      %cst_20 = arith.constant 2.44140625E-4 : f32
      %71 = arith.mulf %70, %cst_20 : f32
      %72 = vector.broadcast %71 : f32 to vector<1x8x128xf32>
      %c0_21 = arith.constant 0 : index
      %c0_22 = arith.constant 0 : index
      %c0_23 = arith.constant 0 : index
      %73 = vector.load %arg8[%c0_21, %c0_22, %c0_23] : memref<1x8x128xf32, #tpu.memory_space<vmem>>, vector<1x8x128xf32>
      tpu.vector_store %arg8[%c0_21, %c0_22, %c0_23], %72 {strides = array<i32>} : memref<1x8x128xf32, #tpu.memory_space<vmem>>, vector<1x8x128xf32>,
    } else {
    }
    return
  }
  func.func @transform_0(%arg0: i32, %arg1: i32) -> (i32, i32, i32) {
    %c1_i32 = arith.constant 1 : i32
    %0 = arith.muli %arg0, %c1_i32 : i32
    %1 = arith.addi %0, %arg1 : i32
    %c0_i32 = arith.constant 0 : i32
    %c0_i32_0 = arith.constant 0 : i32
    %c0_i32_1 = arith.constant 0 : i32
    return %1, %c0_i32, %c0_i32_0 : i32, i32, i32
  }
  func.func @transform_1(%arg0: i32, %arg1: i32) -> (i32, i32) {
    %c1_i32 = arith.constant 1 : i32
    %0 = arith.muli %arg0, %c1_i32 : i32
    %1 = arith.addi %0, %arg1 : i32
    %c0_i32 = arith.constant 0 : i32
    %c0_i32_0 = arith.constant 0 : i32
    return %1, %c0_i32 : i32, i32
  }
  func.func @transform_2(%arg0: i32, %arg1: i32) -> (i32, i32) {
    %c1_i32 = arith.constant 1 : i32
    %0 = arith.muli %arg0, %c1_i32 : i32
    %1 = arith.addi %0, %arg1 : i32
    %c0_i32 = arith.constant 0 : i32
    %c0_i32_0 = arith.constant 0 : i32
    return %1, %c0_i32 : i32, i32
  }
  func.func @transform_3(%arg0: i32, %arg1: i32) -> (i32, i32, i32) {
    %c0_i32 = arith.constant 0 : i32
    %c0_i32_0 = arith.constant 0 : i32
    %c0_i32_1 = arith.constant 0 : i32
    %c0_i32_2 = arith.constant 0 : i32
    return %c0_i32, %c0_i32_0, %c0_i32_1 : i32, i32, i32
  }
  func.func @transform_4(%arg0: i32, %arg1: i32) -> (i32, i32) {
    %c0_i32 = arith.constant 0 : i32
    %c0_i32_0 = arith.constant 0 : i32
    %c0_i32_1 = arith.constant 0 : i32
    return %c0_i32, %c0_i32_0 : i32, i32
  }
  func.func @transform_5(%arg0: i32, %arg1: i32) -> (i32, i32) {
    %c0_i32 = arith.constant 0 : i32
    %c0_i32_0 = arith.constant 0 : i32
    %c0_i32_1 = arith.constant 0 : i32
    return %c0_i32, %c0_i32_0 : i32, i32
  }
  func.func @transform_6(%arg0: i32, %arg1: i32) -> (i32, i32, i32) {
    %c0_i32 = arith.constant 0 : i32
    %c0_i32_0 = arith.constant 0 : i32
    %c0_i32_1 = arith.constant 0 : i32
    return %arg0, %c0_i32, %c0_i32_0 : i32, i32, i32
  }
}

</mosaic_0001>

<llo_original>
// kernel: tpu_custom_call.1
$region0: #{tpu_custom_call.1}
  #allocation0 [shape = 'u32[]', space=smem, size = 0x4, offset = 0x4, fixed_abs, tag = 'smem constant byte address 0x4 - core index']
  #allocation1 [shape = 'u32[144,128]{1,0:T(1,128)}', space=vmem, size = 0x12000, scoped, tag = 'internal scratch']
  #allocation2 [shape = 'f32[2,64]{1,0:T(2,128)}', space=vmem, size = 0x400, scoped, tag = 'scratch operand']
  #allocation3 [shape = 'f32[2,64]{1,0:T(2,128)}', space=vmem, size = 0x400, scoped, tag = 'scratch operand']
  #allocation4 [shape = 'f32[32,64]{1,0:T(8,128)}', space=vmem, size = 0x4000, scoped, tag = 'scratch operand']
  %s0 = inlined_call_operand.vmem [shape: f32[64,4,2], index: 0, kind: input, shape index: {}]
  %s1 = inlined_call_operand.vmem [shape: f32[64,4], index: 1, kind: input, shape index: {}]
  %s2 = inlined_call_operand.vmem [shape: f32[64,2], index: 2, kind: input, shape index: {}]
  %s3 = inlined_call_operand.vmem [shape: f32[4,2,64], index: 3, kind: input, shape index: {}]
  %s4 = inlined_call_operand.vmem [shape: f32[4,64], index: 4, kind: input, shape index: {}]
  %s5 = inlined_call_operand.vmem [shape: f32[2,64], index: 5, kind: input, shape index: {}]
  %s6 = inlined_call_operand.hbm [shape: f32[2,8,128], index: 6, kind: output, shape index: {}]
  %s7 = sld [smem:[#allocation0]]
  $region65: #{tpu_custom_call.1} parent=0
    _
  %s9 = ssub.s32 1, %s7
  %s10 = scalar_select 0, %s9, %s7
  $region1: #{tpu_custom_call.1} parent=0
    #allocation5 [shape = 'u8[8192]{0}', space=vmem, size = 0x2000, scoped, tag = 'output window, operand 0']
    #allocation6 [shape = 's32[2]{0}', space=sflag, size = 0x8, scoped, tag = 'scoped memory for tpu_custom_call.1']
    %11 = vsyncpa [#allocation6], 0
    %s12 = scalar_lea.sflag [#allocation6], 1
    %13 = vsyncpa %s12, 0
    loop: start=0, step=1, limit=4
    $region2: #{tpu_custom_call.1} parent=1 // loop_pre_header
      _
    $region3: #{tpu_custom_call.1} parent=1 // loop_header
      %s15 = sphi 0, %s19
      %p16 = scmp.ge.s32.totalorder %s15, 4
      %s22 = sphi 0, %s34
      %s23 = sphi 0, %s30
      %s24 = sphi 0, %s22
      %s25 = sphi 0, %s23
      %s26 = sphi 0, %s24
      %s27 = sphi 0, %s25
      %s39 = sphi 0, %s41
      %s42 = sphi 0, %s39
      %s43 = sphi 0, %s42
      %s59 = sphi 0, %s43
      %s67 = sphi 0, %s69
      %s70 = sphi 0, %s67
      %s71 = sphi 0, %s70
      %s87 = sphi 0, %s71
      %s95 = sphi 0, %s97
      %s98 = sphi 0, %s95
      %s99 = sphi 0, %s98
      %s115 = sphi 0, %s99
      %s119 = sphi 0, %s119
      %s121 = sphi 0, %s119
      %s122 = sphi 0, %s121
      %s136 = sphi 0, %s122
      %s140 = sphi 0, %s140
      %s142 = sphi 0, %s140
      %s143 = sphi 0, %s142
      %s157 = sphi 0, %s143
      %s161 = sphi 0, %s161
      %s163 = sphi 0, %s161
      %s164 = sphi 0, %s163
      %s178 = sphi 0, %s164
      %s184 = sphi 0, %s186
      %s187 = sphi 0, %s184
      %s188 = sphi 0, %s187
      %s204 = sphi 0, %s188
    $region4: #{tpu_custom_call.1} parent=1 // loop_header_branch
      %18 = sbr.rel (%p16) target = $region8
    $region5: #{tpu_custom_call.1} parent=1 // loop_body
      %s20 = ssub.s32 %s15, 1
      %s21 = ssub.s32 %s15, 2
      %s28 = sadd.s32 1, %s23
      %p29 = scmp.ge.s32.totalorder %s28, 1
      %s30 = scalar_select %p29, 0, %s28
      %s31 = sadd.s32 1, %s22
      %s32 = scalar_select %p29, %s31, %s22
      %p33 = scmp.ge.s32.totalorder %s32, 2
      %s34 = scalar_select %p33, 0, %s32
      %s35 = sadd.s32 %s22, %s23
      %s36 = sadd.s32 %s34, %s30
      %s37 = ssub.s32 %s35, %s36
      %p38 = scmp.eq.s32.totalorder %s37, 0
      %s40 = sadd.s32 %s39, 1
      %s41 = scalar_select %p38, %s39, %s40
      %p44 = pneg %p38
      %p45 = scmp.eq.s32.totalorder %s15, 1
      %p46 = por %p44, %p45
      %p47 = scmp.ne.s32.totalorder %s39, %s42
      %p48 = scmp.eq.s32.totalorder %s15, 0
      %p49 = por %p47, %p48
      %p50 = scmp.ne.s32.totalorder %s39, %s42
      %p51 = scmp.eq.s32.totalorder %s20, 1
      %p52 = por %p50, %p51
      %p53 = scmp.ne.s32.totalorder %s42, %s43
      %p54 = scmp.eq.s32.totalorder %s20, 0
      %p55 = por %p53, %p54
      %p56 = scmp.ne.s32.totalorder %s42, %s43
      %p57 = scmp.eq.s32.totalorder %s21, 1
      %p58 = por %p56, %p57
      %p60 = scmp.ne.s32.totalorder %s43, %s59
      %p61 = scmp.eq.s32.totalorder %s21, 0
      %p62 = por %p60, %p61
      %s63 = sadd.s32 %s22, %s23
      %s64 = sadd.s32 %s34, %s30
      %s65 = ssub.s32 %s63, %s64
      %p66 = scmp.eq.s32.totalorder %s65, 0
      %s68 = sadd.s32 %s67, 1
      %s69 = scalar_select %p66, %s67, %s68
      %p72 = pneg %p66
      %p73 = scmp.eq.s32.totalorder %s15, 1
      %p74 = por %p72, %p73
      %p75 = scmp.ne.s32.totalorder %s67, %s70
      %p76 = scmp.eq.s32.totalorder %s15, 0
      %p77 = por %p75, %p76
      %p78 = scmp.ne.s32.totalorder %s67, %s70
      %p79 = scmp.eq.s32.totalorder %s20, 1
      %p80 = por %p78, %p79
      %p81 = scmp.ne.s32.totalorder %s70, %s71
      %p82 = scmp.eq.s32.totalorder %s20, 0
      %p83 = por %p81, %p82
      %p84 = scmp.ne.s32.totalorder %s70, %s71
      %p85 = scmp.eq.s32.totalorder %s21, 1
      %p86 = por %p84, %p85
      %p88 = scmp.ne.s32.totalorder %s71, %s87
      %p89 = scmp.eq.s32.totalorder %s21, 0
      %p90 = por %p88, %p89
      %s91 = sadd.s32 %s22, %s23
      %s92 = sadd.s32 %s34, %s30
      %s93 = ssub.s32 %s91, %s92
      %p94 = scmp.eq.s32.totalorder %s93, 0
      %s96 = sadd.s32 %s95, 1
      %s97 = scalar_select %p94, %s95, %s96
      %p100 = pneg %p94
      %p101 = scmp.eq.s32.totalorder %s15, 1
      %p102 = por %p100, %p101
      %p103 = scmp.ne.s32.totalorder %s95, %s98
      %p104 = scmp.eq.s32.totalorder %s15, 0
      %p105 = por %p103, %p104
      %p106 = scmp.ne.s32.totalorder %s95, %s98
      %p107 = scmp.eq.s32.totalorder %s20, 1
      %p108 = por %p106, %p107
      %p109 = scmp.ne.s32.totalorder %s98, %s99
      %p110 = scmp.eq.s32.totalorder %s20, 0
      %p111 = por %p109, %p110
      %p112 = scmp.ne.s32.totalorder %s98, %s99
      %p113 = scmp.eq.s32.totalorder %s21, 1
      %p114 = por %p112, %p113
      %p116 = scmp.ne.s32.totalorder %s99, %s115
      %p117 = scmp.eq.s32.totalorder %s21, 0
      %p118 = por %p116, %p117
      %s120 = sadd.s32 %s119, 1
      %p123 = scmp.eq.s32.totalorder %s15, 1
      %p124 = scmp.ne.s32.totalorder %s119, %s121
      %p125 = scmp.eq.s32.totalorder %s15, 0
      %p126 = por %p124, %p125
      %p127 = scmp.ne.s32.totalorder %s119, %s121
      %p128 = scmp.eq.s32.totalorder %s20, 1
      %p129 = por %p127, %p128
      %p130 = scmp.ne.s32.totalorder %s121, %s122
      %p131 = scmp.eq.s32.totalorder %s20, 0
      %p132 = por %p130, %p131
      %p133 = scmp.ne.s32.totalorder %s121, %s122
      %p134 = scmp.eq.s32.totalorder %s21, 1
      %p135 = por %p133, %p134
      %p137 = scmp.ne.s32.totalorder %s122, %s136
      %p138 = scmp.eq.s32.totalorder %s21, 0
      %p139 = por %p137, %p138
      %s141 = sadd.s32 %s140, 1
      %p144 = scmp.eq.s32.totalorder %s15, 1
      %p145 = scmp.ne.s32.totalorder %s140, %s142
      %p146 = scmp.eq.s32.totalorder %s15, 0
      %p147 = por %p145, %p146
      %p148 = scmp.ne.s32.totalorder %s140, %s142
      %p149 = scmp.eq.s32.totalorder %s20, 1
      %p150 = por %p148, %p149
      %p151 = scmp.ne.s32.totalorder %s142, %s143
      %p152 = scmp.eq.s32.totalorder %s20, 0
      %p153 = por %p151, %p152
      %p154 = scmp.ne.s32.totalorder %s142, %s143
      %p155 = scmp.eq.s32.totalorder %s21, 1
      %p156 = por %p154, %p155
      %p158 = scmp.ne.s32.totalorder %s143, %s157
      %p159 = scmp.eq.s32.totalorder %s21, 0
      %p160 = por %p158, %p159
      %s162 = sadd.s32 %s161, 1
      %p165 = scmp.eq.s32.totalorder %s15, 1
      %p166 = scmp.ne.s32.totalorder %s161, %s163
      %p167 = scmp.eq.s32.totalorder %s15, 0
      %p168 = por %p166, %p167
      %p169 = scmp.ne.s32.totalorder %s161, %s163
      %p170 = scmp.eq.s32.totalorder %s20, 1
      %p171 = por %p169, %p170
      %p172 = scmp.ne.s32.totalorder %s163, %s164
      %p173 = scmp.eq.s32.totalorder %s20, 0
      %p174 = por %p172, %p173
      %p175 = scmp.ne.s32.totalorder %s163, %s164
      %p176 = scmp.eq.s32.totalorder %s21, 1
      %p177 = por %p175, %p176
      %p179 = scmp.ne.s32.totalorder %s164, %s178
      %p180 = scmp.eq.s32.totalorder %s21, 0
      %p181 = por %p179, %p180
      %s182 = ssub.s32 %s22, %s34
      %p183 = scmp.eq.s32.totalorder %s182, 0
      %s185 = sadd.s32 %s184, 1
      %s186 = scalar_select %p183, %s184, %s185
      %p189 = pneg %p183
      %p190 = scmp.eq.s32.totalorder %s15, 1
      %p191 = por %p189, %p190
      %p192 = scmp.ne.s32.totalorder %s184, %s187
      %p193 = scmp.eq.s32.totalorder %s15, 0
      %p194 = por %p192, %p193
      %p195 = scmp.ne.s32.totalorder %s184, %s187
      %p196 = scmp.eq.s32.totalorder %s20, 1
      %p197 = por %p195, %p196
      %p198 = scmp.ne.s32.totalorder %s187, %s188
      %p199 = scmp.eq.s32.totalorder %s20, 0
      %p200 = por %p198, %p199
      %p201 = scmp.ne.s32.totalorder %s187, %s188
      %p202 = scmp.eq.s32.totalorder %s21, 1
      %p203 = por %p201, %p202
      %p205 = scmp.ne.s32.totalorder %s188, %s204
      %p206 = scmp.eq.s32.totalorder %s21, 0
      %p207 = por %p205, %p206
      %p208 = scmp.le.s32.totalorder 1, %s15
      %p209 = scmp.lt.s32.totalorder %s15, 3
      %p210 = pnand %p208, %p209
      %p211 = pneg %p210
      // Predicated region
      $region9: #{tpu_custom_call.1} parent=5 // pred_check
        _
      $region10: #{tpu_custom_call.1} parent=5 // pred_check_branch
        %213 = sbr.rel (%p210) target = $region12
      $region11: #{tpu_custom_call.1} parent=5 // pred_region
        %s214 = ssub.s32 %s15, 1
        // Predicated region
        $region13: #{tpu_custom_call.1} parent=11 // pred_check
          %p215 = pneg %p132
        $region14: #{tpu_custom_call.1} parent=11 // pred_check_branch
          %217 = sbr.rel (%p215) target = $region16
        $region15: #{tpu_custom_call.1} parent=11 // pred_region
          _
        $region16: #{tpu_custom_call.1} parent=11 // pred_fallthru
          _
        // Predicated region
        $region17: #{tpu_custom_call.1} parent=11 // pred_check
          %p218 = pneg %p153
        $region18: #{tpu_custom_call.1} parent=11 // pred_check_branch
          %220 = sbr.rel (%p218) target = $region20
        $region19: #{tpu_custom_call.1} parent=11 // pred_region
          _
        $region20: #{tpu_custom_call.1} parent=11 // pred_fallthru
          _
        // Predicated region
        $region21: #{tpu_custom_call.1} parent=11 // pred_check
          %p221 = pneg %p174
        $region22: #{tpu_custom_call.1} parent=11 // pred_check_branch
          %223 = sbr.rel (%p221) target = $region24
        $region23: #{tpu_custom_call.1} parent=11 // pred_region
          _
        $region24: #{tpu_custom_call.1} parent=11 // pred_fallthru
          _
      $region12: #{tpu_custom_call.1} parent=5 // pred_fallthru
        _
      %p224 = scmp.lt.s32.totalorder %s15, 2
      // Predicated region
      $region25: #{tpu_custom_call.1} parent=5 // pred_check
        %p225 = pneg %p224
      $region26: #{tpu_custom_call.1} parent=5 // pred_check_branch
        %227 = sbr.rel (%p225) target = $region28
      $region27: #{tpu_custom_call.1} parent=5 // pred_region
        // Predicated region
        $region29: #{tpu_custom_call.1} parent=27 // pred_check
          %p228 = pneg %p49
        $region30: #{tpu_custom_call.1} parent=27 // pred_check_branch
          %230 = sbr.rel (%p228) target = $region32
        $region31: #{tpu_custom_call.1} parent=27 // pred_region
          %s231 = sadd.s32 %s22, %s23
          %s232 = smul.u32 32, %s231
          %p233 = scmp.lt.s32.totalorder %s232, 63
          %s234 = scalar_select %p233, %s232, 63
          %s235 = smul.addr %s234, 4
          %s236 = scalar_lea.vmem %s0, %s235
          %s237 = sadd.s32 %s22, %s23
          %s238 = smul.u32 32, %s237
        $region32: #{tpu_custom_call.1} parent=27 // pred_fallthru
          _
        // Predicated region
        $region33: #{tpu_custom_call.1} parent=27 // pred_check
          %p239 = pneg %p77
        $region34: #{tpu_custom_call.1} parent=27 // pred_check_branch
          %241 = sbr.rel (%p239) target = $region36
        $region35: #{tpu_custom_call.1} parent=27 // pred_region
          %s242 = sadd.s32 %s22, %s23
          %s243 = smul.u32 4, %s242
          %p244 = scmp.lt.s32.totalorder %s243, 7
          %s245 = scalar_select %p244, %s243, 7
          %s246 = smul.addr %s245, 8
          %s247 = scalar_lea.vmem %s1, %s246
          %s248 = sadd.s32 %s22, %s23
          %s249 = smul.u32 4, %s248
        $region36: #{tpu_custom_call.1} parent=27 // pred_fallthru
          _
        // Predicated region
        $region37: #{tpu_custom_call.1} parent=27 // pred_check
          %p250 = pneg %p105
        $region38: #{tpu_custom_call.1} parent=27 // pred_check_branch
          %252 = sbr.rel (%p250) target = $region40
        $region39: #{tpu_custom_call.1} parent=27 // pred_region
          %s253 = sadd.s32 %s22, %s23
          %s254 = smul.u32 4, %s253
          %p255 = scmp.lt.s32.totalorder %s254, 7
          %s256 = scalar_select %p255, %s254, 7
          %s257 = smul.addr %s256, 8
          %s258 = scalar_lea.vmem %s2, %s257
          %s259 = sadd.s32 %s22, %s23
          %s260 = smul.u32 4, %s259
        $region40: #{tpu_custom_call.1} parent=27 // pred_fallthru
          _
      $region28: #{tpu_custom_call.1} parent=5 // pred_fallthru
        _
      %p261 = scmp.le.s32.totalorder 1, %s15
      %p262 = scmp.lt.s32.totalorder %s15, 3
      %p263 = pnand %p261, %p262
      %p264 = pneg %p263
      // Predicated region
      $region41: #{tpu_custom_call.1} parent=5 // pred_check
        _
      $region42: #{tpu_custom_call.1} parent=5 // pred_check_branch
        %266 = sbr.rel (%p263) target = $region44
      $region43: #{tpu_custom_call.1} parent=5 // pred_region
        %s267 = ssub.s32 %s15, 1
        %s268 = sadd.s32 %s24, %s25
        %s269 = smul.u32 32, %s268
        %p270 = scmp.lt.s32.totalorder %s269, 63
        %s271 = scalar_select %p270, %s269, 63
        %s272 = smul.addr %s271, 4
        %s273 = scalar_lea.vmem %s0, %s272
        %p274 = pneg %p55
        %p275 = pneg %p52
        %s276 = sadd.s32 %s24, %s25
        %s277 = smul.u32 4, %s276
        %p278 = scmp.lt.s32.totalorder %s277, 7
        %s279 = scalar_select %p278, %s277, 7
        %s280 = smul.addr %s279, 8
        %s281 = scalar_lea.vmem %s1, %s280
        %p282 = pneg %p83
        %p283 = pneg %p80
        %s284 = sadd.s32 %s24, %s25
        %s285 = smul.u32 4, %s284
        %p286 = scmp.lt.s32.totalorder %s285, 7
        %s287 = scalar_select %p286, %s285, 7
        %s288 = smul.addr %s287, 8
        %s289 = scalar_lea.vmem %s2, %s288
        %p290 = pneg %p111
        %p291 = pneg %p108
        %p292 = pneg %p132
        %p293 = pneg %p129
        %p294 = pneg %p153
        %p295 = pneg %p150
        %p296 = pneg %p174
        %p297 = pneg %p171
        %p298 = pneg %p200
        %p299 = pneg %p197
        %s300 = sand.u32 %s187, 1
        %s301 = scalar_lea.sflag [#allocation6], %s300
        %s302 = sand.u32 %s187, 1
        %s303 = smul.addr %s302, 8
        %s304 = scalar_lea.vmem [#allocation5], %s303
        %s305 = sadd.s32 %s24, %s25
        %s306 = smul.u32 32, %s305
        %p307 = scmp.lt.s32.totalorder %s306, 63
        %s308 = scalar_select %p307, %s306, 63
        %s309 = smul.addr %s308, 4
        %s310 = scalar_lea.vmem %s0, %s309
        %s311 = sadd.s32 %s24, %s25
        %s312 = smul.u32 32, %s311
        %s313 = sadd.s32 %s24, %s25
        %s314 = smul.u32 4, %s313
        %p315 = scmp.lt.s32.totalorder %s314, 7
        %s316 = scalar_select %p315, %s314, 7
        %s317 = smul.addr %s316, 8
        %s318 = scalar_lea.vmem %s1, %s317
        %s319 = sadd.s32 %s24, %s25
        %s320 = smul.u32 4, %s319
        %s321 = sadd.s32 %s24, %s25
        %s322 = smul.u32 4, %s321
        %p323 = scmp.lt.s32.totalorder %s322, 7
        %s324 = scalar_select %p323, %s322, 7
        %s325 = smul.addr %s324, 8
        %s326 = scalar_lea.vmem %s2, %s325
        %s327 = sadd.s32 %s24, %s25
        %s328 = smul.u32 4, %s327
        %p329 = scmp.eq.s32.totalorder %s25, 0
        // Predicated region
        $region45: #{tpu_custom_call.1} parent=43 // pred_check
          %p330 = pneg %p329
        $region46: #{tpu_custom_call.1} parent=43 // pred_check_branch
          %332 = sbr.rel (%p330) target = $region48
        $region47: #{tpu_custom_call.1} parent=43 // pred_region
          %v333 = vld [vmem:[%s3] sm:$0x3]
          %v334 = vld [vmem:[%s3 + $0x2] sm:$0x3]
          %v335 = vld [vmem:[%s3 + $0x4] sm:$0x3]
          %v336 = vld [vmem:[%s3 + $0x6] sm:$0x3]
          %v337 = vld [vmem:[%s4] sm:$0xf]
          %v338 = vlaneseq
          %v339 = vshrl.u32 %v338, 7
          %v340 = vsub.s32 0, %v339
          %v341 = vrot.slane %v337, %v340
          %v342 = vmul.f32 %v341, %v333
          %v343 = vlaneseq
          %v344 = vshrl.u32 %v343, 7
          %v345 = vsub.s32 1, %v344
          %v346 = vrot.slane %v337, %v345
          %v347 = vmul.f32 %v346, %v334
          %v348 = vadd.f32 %v342, %v347
          %v349 = vlaneseq
          %v350 = vshrl.u32 %v349, 7
          %v351 = vsub.s32 2, %v350
          %v352 = vrot.slane %v337, %v351
          %v353 = vmul.f32 %v352, %v335
          %v354 = vadd.f32 %v348, %v353
          %v355 = vlaneseq
          %v356 = vshrl.u32 %v355, 7
          %v357 = vsub.s32 3, %v356
          %v358 = vrot.slane %v337, %v357
          %v359 = vmul.f32 %v358, %v336
          %v360 = vadd.f32 %v354, %v359
          %vm361 = vcmask 517120
          %362 = vst.msk [vmem:[#allocation2] sm:$0x3] %vm361, %v360
          %v363 = vld [vmem:[%s5] sm:$0x3]
          %v364 = vsub.f32 %v363, %v360
          %365 = vst.msk [vmem:[#allocation3] sm:$0x3] %vm361, %v364
          %vm366 = vcmask 523264
          %367 = vst.msk [vmem:[#allocation4] sm:$0xff] %vm366, 0.0
          %368 = vst.msk [vmem:[#allocation4 + $0x8] sm:$0xff] %vm366, 0.0
          %369 = vst.msk [vmem:[#allocation4 + $0x10] sm:$0xff] %vm366, 0.0
          %370 = vst.msk [vmem:[#allocation4 + $0x18] sm:$0xff] %vm366, 0.0
        $region48: #{tpu_custom_call.1} parent=43 // pred_fallthru
          _
        %v371 = vld [vmem:[%s310] sm:$0xf]
        %v372 = vld [vmem:[%s310 + $0x4] sm:$0xf]
        %v373 = vld [vmem:[%s310 + $0x8] sm:$0xf]
        %v374 = vld [vmem:[%s310 + $0xc] sm:$0xf]
        %v375 = vld [vmem:[%s310 + $0x10] sm:$0xf]
        %v376 = vld [vmem:[%s310 + $0x14] sm:$0xf]
        %v377 = vld [vmem:[%s310 + $0x18] sm:$0xf]
        %v378 = vld [vmem:[%s310 + $0x1c] sm:$0xf]
        %v379 = vld [vmem:[%s310 + $0x20] sm:$0xf]
        %v380 = vld [vmem:[%s310 + $0x24] sm:$0xf]
        %v381 = vld [vmem:[%s310 + $0x28] sm:$0xf]
        %v382 = vld [vmem:[%s310 + $0x2c] sm:$0xf]
        %v383 = vld [vmem:[%s310 + $0x30] sm:$0xf]
        %v384 = vld [vmem:[%s310 + $0x34] sm:$0xf]
        %v385 = vld [vmem:[%s310 + $0x38] sm:$0xf]
        %v386 = vld [vmem:[%s310 + $0x3c] sm:$0xf]
        %v387 = vld [vmem:[%s310 + $0x40] sm:$0xf]
        %v388 = vld [vmem:[%s310 + $0x44] sm:$0xf]
        %v389 = vld [vmem:[%s310 + $0x48] sm:$0xf]
        %v390 = vld [vmem:[%s310 + $0x4c] sm:$0xf]
        %v391 = vld [vmem:[%s310 + $0x50] sm:$0xf]
        %v392 = vld [vmem:[%s310 + $0x54] sm:$0xf]
        %v393 = vld [vmem:[%s310 + $0x58] sm:$0xf]
        %v394 = vld [vmem:[%s310 + $0x5c] sm:$0xf]
        %v395 = vld [vmem:[%s310 + $0x60] sm:$0xf]
        %v396 = vld [vmem:[%s310 + $0x64] sm:$0xf]
        %v397 = vld [vmem:[%s310 + $0x68] sm:$0xf]
        %v398 = vld [vmem:[%s310 + $0x6c] sm:$0xf]
        %v399 = vld [vmem:[%s310 + $0x70] sm:$0xf]
        %v400 = vld [vmem:[%s310 + $0x74] sm:$0xf]
        %v401 = vld [vmem:[%s310 + $0x78] sm:$0xf]
        %v402 = vld [vmem:[%s310 + $0x7c] sm:$0xf]
        %v403 = vld [vmem:[%s318] sm:$0xff]
        %v404 = vld [vmem:[%s318 + $0x8] sm:$0xff]
        %v405 = vld [vmem:[%s318 + $0x10] sm:$0xff]
        %v406 = vld [vmem:[%s318 + $0x18] sm:$0xff]
        %408 = vset.pattern.permute.xlu0 0
        %409 = vperm.xlu0 %408, %v403
        %v410 = vpop.permute.xlu0 %409
        %413 = vset.pattern.permute.xlu0 0
        %414 = vperm.xlu0 %413, %v404
        %v415 = vpop.permute.xlu0 %414
        %418 = vset.pattern.permute.xlu0 0
        %419 = vperm.xlu0 %418, %v405
        %v420 = vpop.permute.xlu0 %419
        %423 = vset.pattern.permute.xlu0 0
        %424 = vperm.xlu0 %423, %v406
        %v425 = vpop.permute.xlu0 %424
        %v459 = vrot.slane %v372, 7
        %vm460 = vcmask 1041409
        %v461 = vsel %vm460, %v459, %v371
        %v462 = vrot.slane %v373, 6
        %vm463 = vcmask 1042434
        %v464 = vsel %vm463, %v462, %v461
        %v465 = vrot.slane %v374, 5
        %vm466 = vcmask 1043459
        %v467 = vsel %vm466, %v465, %v464
        %v468 = vrot.slane %v375, 4
        %vm469 = vcmask 1044484
        %v470 = vsel %vm469, %v468, %v467
        %v471 = vrot.slane %v376, 3
        %vm472 = vcmask 1045509
        %v473 = vsel %vm472, %v471, %v470
        %v474 = vrot.slane %v377, 2
        %vm475 = vcmask 1046534
        %v476 = vsel %vm475, %v474, %v473
        %v477 = vrot.slane %v378, 1
        %vm478 = vcmask 1047559
        %v479 = vsel %vm478, %v477, %v476
        %v480 = vrot.slane %v380, 7
        %v481 = vsel %vm460, %v480, %v379
        %v482 = vrot.slane %v381, 6
        %v483 = vsel %vm463, %v482, %v481
        %v484 = vrot.slane %v382, 5
        %v485 = vsel %vm466, %v484, %v483
        %v486 = vrot.slane %v383, 4
        %v487 = vsel %vm469, %v486, %v485
        %v488 = vrot.slane %v384, 3
        %v489 = vsel %vm472, %v488, %v487
        %v490 = vrot.slane %v385, 2
        %v491 = vsel %vm475, %v490, %v489
        %v492 = vrot.slane %v386, 1
        %v493 = vsel %vm478, %v492, %v491
        %v494 = vrot.slane %v388, 7
        %v495 = vsel %vm460, %v494, %v387
        %v496 = vrot.slane %v389, 6
        %v497 = vsel %vm463, %v496, %v495
        %v498 = vrot.slane %v390, 5
        %v499 = vsel %vm466, %v498, %v497
        %v500 = vrot.slane %v391, 4
        %v501 = vsel %vm469, %v500, %v499
        %v502 = vrot.slane %v392, 3
        %v503 = vsel %vm472, %v502, %v501
        %v504 = vrot.slane %v393, 2
        %v505 = vsel %vm475, %v504, %v503
        %v506 = vrot.slane %v394, 1
        %v507 = vsel %vm478, %v506, %v505
        %v508 = vrot.slane %v396, 7
        %v509 = vsel %vm460, %v508, %v395
        %v510 = vrot.slane %v397, 6
        %v511 = vsel %vm463, %v510, %v509
        %v512 = vrot.slane %v398, 5
        %v513 = vsel %vm466, %v512, %v511
        %v514 = vrot.slane %v399, 4
        %v515 = vsel %vm469, %v514, %v513
        %v516 = vrot.slane %v400, 3
        %v517 = vsel %vm472, %v516, %v515
        %v518 = vrot.slane %v401, 2
        %v519 = vsel %vm475, %v518, %v517
        %v520 = vrot.slane %v402, 1
        %v521 = vsel %vm478, %v520, %v519
        %v526 = vmul.f32 %v410, %v479
        %v527 = vmul.f32 %v415, %v493
        %v528 = vmul.f32 %v420, %v507
        %v529 = vmul.f32 %v425, %v521
        %530 = vset.pattern.permute.xlu0 1
        %531 = vperm.xlu0 %530, %v403
        %v532 = vpop.permute.xlu0 %531
        %534 = vset.pattern.permute.xlu0 1
        %535 = vperm.xlu0 %534, %v404
        %v536 = vpop.permute.xlu0 %535
        %538 = vset.pattern.permute.xlu0 1
        %539 = vperm.xlu0 %538, %v405
        %v540 = vpop.permute.xlu0 %539
        %542 = vset.pattern.permute.xlu0 1
        %543 = vperm.xlu0 %542, %v406
        %v544 = vpop.permute.xlu0 %543
        %v546 = vrot.slane %v371, 1
        %v547 = vsel %vm460, %v372, %v546
        %v548 = vrot.slane %v373, 7
        %v549 = vsel %vm463, %v548, %v547
        %v550 = vrot.slane %v374, 6
        %v551 = vsel %vm466, %v550, %v549
        %v552 = vrot.slane %v375, 5
        %v553 = vsel %vm469, %v552, %v551
        %v554 = vrot.slane %v376, 4
        %v555 = vsel %vm472, %v554, %v553
        %v556 = vrot.slane %v377, 3
        %v557 = vsel %vm475, %v556, %v555
        %v558 = vrot.slane %v378, 2
        %v559 = vsel %vm478, %v558, %v557
        %v560 = vrot.slane %v379, 1
        %v561 = vsel %vm460, %v380, %v560
        %v562 = vrot.slane %v381, 7
        %v563 = vsel %vm463, %v562, %v561
        %v564 = vrot.slane %v382, 6
        %v565 = vsel %vm466, %v564, %v563
        %v566 = vrot.slane %v383, 5
        %v567 = vsel %vm469, %v566, %v565
        %v568 = vrot.slane %v384, 4
        %v569 = vsel %vm472, %v568, %v567
        %v570 = vrot.slane %v385, 3
        %v571 = vsel %vm475, %v570, %v569
        %v572 = vrot.slane %v386, 2
        %v573 = vsel %vm478, %v572, %v571
        %v574 = vrot.slane %v387, 1
        %v575 = vsel %vm460, %v388, %v574
        %v576 = vrot.slane %v389, 7
        %v577 = vsel %vm463, %v576, %v575
        %v578 = vrot.slane %v390, 6
        %v579 = vsel %vm466, %v578, %v577
        %v580 = vrot.slane %v391, 5
        %v581 = vsel %vm469, %v580, %v579
        %v582 = vrot.slane %v392, 4
        %v583 = vsel %vm472, %v582, %v581
        %v584 = vrot.slane %v393, 3
        %v585 = vsel %vm475, %v584, %v583
        %v586 = vrot.slane %v394, 2
        %v587 = vsel %vm478, %v586, %v585
        %v588 = vrot.slane %v395, 1
        %v589 = vsel %vm460, %v396, %v588
        %v590 = vrot.slane %v397, 7
        %v591 = vsel %vm463, %v590, %v589
        %v592 = vrot.slane %v398, 6
        %v593 = vsel %vm466, %v592, %v591
        %v594 = vrot.slane %v399, 5
        %v595 = vsel %vm469, %v594, %v593
        %v596 = vrot.slane %v400, 4
        %v597 = vsel %vm472, %v596, %v595
        %v598 = vrot.slane %v401, 3
        %v599 = vsel %vm475, %v598, %v597
        %v600 = vrot.slane %v402, 2
        %v601 = vsel %vm478, %v600, %v599
        %v606 = vmul.f32 %v532, %v559
        %v607 = vmul.f32 %v536, %v573
        %v608 = vmul.f32 %v540, %v587
        %v609 = vmul.f32 %v544, %v601
        %v610 = vadd.f32 %v526, %v606
        %v611 = vadd.f32 %v527, %v607
        %v612 = vadd.f32 %v528, %v608
        %v613 = vadd.f32 %v529, %v609
        %614 = vset.pattern.permute.xlu0 2
        %615 = vperm.xlu0 %614, %v403
        %v616 = vpop.permute.xlu0 %615
        %618 = vset.pattern.permute.xlu0 2
        %619 = vperm.xlu0 %618, %v404
        %v620 = vpop.permute.xlu0 %619
        %622 = vset.pattern.permute.xlu0 2
        %623 = vperm.xlu0 %622, %v405
        %v624 = vpop.permute.xlu0 %623
        %626 = vset.pattern.permute.xlu0 2
        %627 = vperm.xlu0 %626, %v406
        %v628 = vpop.permute.xlu0 %627
        %v630 = vrot.slane %v371, 2
        %v631 = vrot.slane %v372, 1
        %v632 = vsel %vm460, %v631, %v630
        %v633 = vsel %vm463, %v373, %v632
        %v634 = vrot.slane %v374, 7
        %v635 = vsel %vm466, %v634, %v633
        %v636 = vrot.slane %v375, 6
        %v637 = vsel %vm469, %v636, %v635
        %v638 = vrot.slane %v376, 5
        %v639 = vsel %vm472, %v638, %v637
        %v640 = vrot.slane %v377, 4
        %v641 = vsel %vm475, %v640, %v639
        %v642 = vrot.slane %v378, 3
        %v643 = vsel %vm478, %v642, %v641
        %v644 = vrot.slane %v379, 2
        %v645 = vrot.slane %v380, 1
        %v646 = vsel %vm460, %v645, %v644
        %v647 = vsel %vm463, %v381, %v646
        %v648 = vrot.slane %v382, 7
        %v649 = vsel %vm466, %v648, %v647
        %v650 = vrot.slane %v383, 6
        %v651 = vsel %vm469, %v650, %v649
        %v652 = vrot.slane %v384, 5
        %v653 = vsel %vm472, %v652, %v651
        %v654 = vrot.slane %v385, 4
        %v655 = vsel %vm475, %v654, %v653
        %v656 = vrot.slane %v386, 3
        %v657 = vsel %vm478, %v656, %v655
        %v658 = vrot.slane %v387, 2
        %v659 = vrot.slane %v388, 1
        %v660 = vsel %vm460, %v659, %v658
        %v661 = vsel %vm463, %v389, %v660
        %v662 = vrot.slane %v390, 7
        %v663 = vsel %vm466, %v662, %v661
        %v664 = vrot.slane %v391, 6
        %v665 = vsel %vm469, %v664, %v663
        %v666 = vrot.slane %v392, 5
        %v667 = vsel %vm472, %v666, %v665
        %v668 = vrot.slane %v393, 4
        %v669 = vsel %vm475, %v668, %v667
        %v670 = vrot.slane %v394, 3
        %v671 = vsel %vm478, %v670, %v669
        %v672 = vrot.slane %v395, 2
        %v673 = vrot.slane %v396, 1
        %v674 = vsel %vm460, %v673, %v672
        %v675 = vsel %vm463, %v397, %v674
        %v676 = vrot.slane %v398, 7
        %v677 = vsel %vm466, %v676, %v675
        %v678 = vrot.slane %v399, 6
        %v679 = vsel %vm469, %v678, %v677
        %v680 = vrot.slane %v400, 5
        %v681 = vsel %vm472, %v680, %v679
        %v682 = vrot.slane %v401, 4
        %v683 = vsel %vm475, %v682, %v681
        %v684 = vrot.slane %v402, 3
        %v685 = vsel %vm478, %v684, %v683
        %v690 = vmul.f32 %v616, %v643
        %v691 = vmul.f32 %v620, %v657
        %v692 = vmul.f32 %v624, %v671
        %v693 = vmul.f32 %v628, %v685
        %v694 = vadd.f32 %v610, %v690
        %v695 = vadd.f32 %v611, %v691
        %v696 = vadd.f32 %v612, %v692
        %v697 = vadd.f32 %v613, %v693
        %698 = vset.pattern.permute.xlu0 3
        %699 = vperm.xlu0 %698, %v403
        %v700 = vpop.permute.xlu0 %699
        %702 = vset.pattern.permute.xlu0 3
        %703 = vperm.xlu0 %702, %v404
        %v704 = vpop.permute.xlu0 %703
        %706 = vset.pattern.permute.xlu0 3
        %707 = vperm.xlu0 %706, %v405
        %v708 = vpop.permute.xlu0 %707
        %710 = vset.pattern.permute.xlu0 3
        %711 = vperm.xlu0 %710, %v406
        %v712 = vpop.permute.xlu0 %711
        %v714 = vrot.slane %v371, 3
        %v715 = vrot.slane %v372, 2
        %v716 = vsel %vm460, %v715, %v714
        %v717 = vrot.slane %v373, 1
        %v718 = vsel %vm463, %v717, %v716
        %v719 = vsel %vm466, %v374, %v718
        %v720 = vrot.slane %v375, 7
        %v721 = vsel %vm469, %v720, %v719
        %v722 = vrot.slane %v376, 6
        %v723 = vsel %vm472, %v722, %v721
        %v724 = vrot.slane %v377, 5
        %v725 = vsel %vm475, %v724, %v723
        %v726 = vrot.slane %v378, 4
        %v727 = vsel %vm478, %v726, %v725
        %v728 = vrot.slane %v379, 3
        %v729 = vrot.slane %v380, 2
        %v730 = vsel %vm460, %v729, %v728
        %v731 = vrot.slane %v381, 1
        %v732 = vsel %vm463, %v731, %v730
        %v733 = vsel %vm466, %v382, %v732
        %v734 = vrot.slane %v383, 7
        %v735 = vsel %vm469, %v734, %v733
        %v736 = vrot.slane %v384, 6
        %v737 = vsel %vm472, %v736, %v735
        %v738 = vrot.slane %v385, 5
        %v739 = vsel %vm475, %v738, %v737
        %v740 = vrot.slane %v386, 4
        %v741 = vsel %vm478, %v740, %v739
        %v742 = vrot.slane %v387, 3
        %v743 = vrot.slane %v388, 2
        %v744 = vsel %vm460, %v743, %v742
        %v745 = vrot.slane %v389, 1
        %v746 = vsel %vm463, %v745, %v744
        %v747 = vsel %vm466, %v390, %v746
        %v748 = vrot.slane %v391, 7
        %v749 = vsel %vm469, %v748, %v747
        %v750 = vrot.slane %v392, 6
        %v751 = vsel %vm472, %v750, %v749
        %v752 = vrot.slane %v393, 5
        %v753 = vsel %vm475, %v752, %v751
        %v754 = vrot.slane %v394, 4
        %v755 = vsel %vm478, %v754, %v753
        %v756 = vrot.slane %v395, 3
        %v757 = vrot.slane %v396, 2
        %v758 = vsel %vm460, %v757, %v756
        %v759 = vrot.slane %v397, 1
        %v760 = vsel %vm463, %v759, %v758
        %v761 = vsel %vm466, %v398, %v760
        %v762 = vrot.slane %v399, 7
        %v763 = vsel %vm469, %v762, %v761
        %v764 = vrot.slane %v400, 6
        %v765 = vsel %vm472, %v764, %v763
        %v766 = vrot.slane %v401, 5
        %v767 = vsel %vm475, %v766, %v765
        %v768 = vrot.slane %v402, 4
        %v769 = vsel %vm478, %v768, %v767
        %v774 = vmul.f32 %v700, %v727
        %v775 = vmul.f32 %v704, %v741
        %v776 = vmul.f32 %v708, %v755
        %v777 = vmul.f32 %v712, %v769
        %v778 = vadd.f32 %v694, %v774
        %v779 = vadd.f32 %v695, %v775
        %v780 = vadd.f32 %v696, %v776
        %v781 = vadd.f32 %v697, %v777
        %v782 = vld [vmem:[%s326] sm:$0xff]
        %v783 = vld [vmem:[%s326 + $0x8] sm:$0xff]
        %v784 = vld [vmem:[%s326 + $0x10] sm:$0xff]
        %v785 = vld [vmem:[%s326 + $0x18] sm:$0xff]
        %v786 = vsub.f32 %v782, %v778
        %v787 = vsub.f32 %v783, %v779
        %v788 = vsub.f32 %v784, %v780
        %v789 = vsub.f32 %v785, %v781
        %v790 = vld [vmem:[#allocation2] sm:$0x3]
        %v791 = vld [vmem:[#allocation3] sm:$0x3]
        %793 = vset.pattern.permute.xlu0 0
        %794 = vperm.xlu0 %793, %v778
        %v795 = vpop.permute.xlu0 %794
        %798 = vset.pattern.permute.xlu0 0
        %799 = vperm.xlu0 %798, %v779
        %v800 = vpop.permute.xlu0 %799
        %803 = vset.pattern.permute.xlu0 0
        %804 = vperm.xlu0 %803, %v780
        %v805 = vpop.permute.xlu0 %804
        %808 = vset.pattern.permute.xlu0 0
        %809 = vperm.xlu0 %808, %v781
        %v810 = vpop.permute.xlu0 %809
        %v812 = vlaneseq
        %v813 = vshrl.u32 %v812, 7
        %v814 = vsub.s32 0, %v813
        %v815 = vrot.slane %v790, %v814
        %v816 = vsub.f32 %v795, %v815
        %v817 = vsub.f32 %v800, %v815
        %v818 = vsub.f32 %v805, %v815
        %v819 = vsub.f32 %v810, %v815
        %821 = vset.pattern.permute.xlu0 0
        %822 = vperm.xlu0 %821, %v786
        %v823 = vpop.permute.xlu0 %822
        %826 = vset.pattern.permute.xlu0 0
        %827 = vperm.xlu0 %826, %v787
        %v828 = vpop.permute.xlu0 %827
        %831 = vset.pattern.permute.xlu0 0
        %832 = vperm.xlu0 %831, %v788
        %v833 = vpop.permute.xlu0 %832
        %836 = vset.pattern.permute.xlu0 0
        %837 = vperm.xlu0 %836, %v789
        %v838 = vpop.permute.xlu0 %837
        %v840 = vlaneseq
        %v841 = vshrl.u32 %v840, 7
        %v842 = vsub.s32 0, %v841
        %v843 = vrot.slane %v791, %v842
        %v844 = vmul.f32 %v823, %v843
        %v845 = vmul.f32 %v828, %v843
        %v846 = vmul.f32 %v833, %v843
        %v847 = vmul.f32 %v838, %v843
        %v848 = vmul.f32 %v816, %v816
        %v849 = vmul.f32 %v817, %v817
        %v850 = vmul.f32 %v818, %v818
        %v851 = vmul.f32 %v819, %v819
        %852 = vset.pattern.permute.xlu0 1
        %853 = vperm.xlu0 %852, %v778
        %v854 = vpop.permute.xlu0 %853
        %856 = vset.pattern.permute.xlu0 1
        %857 = vperm.xlu0 %856, %v779
        %v858 = vpop.permute.xlu0 %857
        %860 = vset.pattern.permute.xlu0 1
        %861 = vperm.xlu0 %860, %v780
        %v862 = vpop.permute.xlu0 %861
        %864 = vset.pattern.permute.xlu0 1
        %865 = vperm.xlu0 %864, %v781
        %v866 = vpop.permute.xlu0 %865
        %v868 = vlaneseq
        %v869 = vshrl.u32 %v868, 7
        %v870 = vsub.s32 1, %v869
        %v871 = vrot.slane %v790, %v870
        %v872 = vsub.f32 %v854, %v871
        %v873 = vsub.f32 %v858, %v871
        %v874 = vsub.f32 %v862, %v871
        %v875 = vsub.f32 %v866, %v871
        %876 = vset.pattern.permute.xlu0 1
        %877 = vperm.xlu0 %876, %v786
        %v878 = vpop.permute.xlu0 %877
        %880 = vset.pattern.permute.xlu0 1
        %881 = vperm.xlu0 %880, %v787
        %v882 = vpop.permute.xlu0 %881
        %884 = vset.pattern.permute.xlu0 1
        %885 = vperm.xlu0 %884, %v788
        %v886 = vpop.permute.xlu0 %885
        %888 = vset.pattern.permute.xlu0 1
        %889 = vperm.xlu0 %888, %v789
        %v890 = vpop.permute.xlu0 %889
        %v892 = vlaneseq
        %v893 = vshrl.u32 %v892, 7
        %v894 = vsub.s32 1, %v893
        %v895 = vrot.slane %v791, %v894
        %v896 = vmul.f32 %v878, %v895
        %v897 = vmul.f32 %v882, %v895
        %v898 = vmul.f32 %v886, %v895
        %v899 = vmul.f32 %v890, %v895
        %v900 = vmul.f32 %v872, %v872
        %v901 = vmul.f32 %v873, %v873
        %v902 = vmul.f32 %v874, %v874
        %v903 = vmul.f32 %v875, %v875
        %v904 = vadd.f32 %v848, %v900
        %v905 = vadd.f32 %v849, %v901
        %v906 = vadd.f32 %v850, %v902
        %v907 = vadd.f32 %v851, %v903
        %v908 = vadd.f32 %v844, %v896
        %v909 = vadd.f32 %v845, %v897
        %v910 = vadd.f32 %v846, %v898
        %v911 = vadd.f32 %v847, %v899
        %v912 = vld [vmem:[#allocation4] sm:$0xff]
        %v913 = vld [vmem:[#allocation4 + $0x8] sm:$0xff]
        %v914 = vld [vmem:[#allocation4 + $0x10] sm:$0xff]
        %v915 = vld [vmem:[#allocation4 + $0x18] sm:$0xff]
        %v916 = vmul.f32 %v904, -2.0
        %v917 = vmul.f32 %v905, -2.0
        %v918 = vmul.f32 %v906, -2.0
        %v919 = vmul.f32 %v907, -2.0
        %v920 = vmul.f32 %v916, 1.442695
        %v921 = vpow.pop %v920
        %v922 = vmul.f32 %v917, 1.442695
        %v923 = vpow.pop %v922
        %v924 = vmul.f32 %v918, 1.442695
        %v925 = vpow.pop %v924
        %v926 = vmul.f32 %v919, 1.442695
        %v927 = vpow.pop %v926
        %v928 = vmul.f32 %v921, %v908
        %v929 = vmul.f32 %v923, %v909
        %v930 = vmul.f32 %v925, %v910
        %v931 = vmul.f32 %v927, %v911
        %v932 = vadd.f32 %v912, %v928
        %v933 = vadd.f32 %v913, %v929
        %v934 = vadd.f32 %v914, %v930
        %v935 = vadd.f32 %v915, %v931
        %vm936 = vcmask 523264
        %937 = vst.msk [vmem:[#allocation4] sm:$0xff] %vm936, %v932
        %938 = vst.msk [vmem:[#allocation4 + $0x8] sm:$0xff] %vm936, %v933
        %939 = vst.msk [vmem:[#allocation4 + $0x10] sm:$0xff] %vm936, %v934
        %940 = vst.msk [vmem:[#allocation4 + $0x18] sm:$0xff] %vm936, %v935
        // Predicated region
        $region49: #{tpu_custom_call.1} parent=43 // pred_check
          %p941 = pneg %p329
        $region50: #{tpu_custom_call.1} parent=43 // pred_check_branch
          %943 = sbr.rel (%p941) target = $region52
        $region51: #{tpu_custom_call.1} parent=43 // pred_region
          %v944 = vld [vmem:[#allocation4] sm:$0xff]
          %v945 = vld [vmem:[#allocation4 + $0x8] sm:$0xff]
          %v946 = vld [vmem:[#allocation4 + $0x10] sm:$0xff]
          %v947 = vld [vmem:[#allocation4 + $0x18] sm:$0xff]
          %v948 = vsel %vm936, %v944, 0.0
          %v949 = vsel %vm936, %v945, 0.0
          %v950 = vadd.f32 %v948, %v949
          %v951 = vsel %vm936, %v946, 0.0
          %v952 = vadd.f32 %v950, %v951
          %v953 = vsel %vm936, %v947, 0.0
          %v954 = vadd.f32 %v952, %v953
          %955 = vadd.xlane.f32.xlu0 %v954
          %v956 = vpop.xlane.xlu0 %955
          %v957 = vrot.slane %v956, 4
          %v958 = vadd.f32 %v956, %v957
          %v959 = vrot.slane %v958, 2
          %v960 = vadd.f32 %v958, %v959
          %v961 = vrot.slane %v960, 1
          %v962 = vadd.f32 %v960, %v961
          %s963 = vtos %v962
          %s964 = smul.f32 %s963, 0.00024414063
          %v965 = vstv %s964
          %966 = vst [vmem:[%s304] sm:$0xff] %v965
        $region52: #{tpu_custom_call.1} parent=43 // pred_fallthru
          _
        %s967 = sand.u32 %s187, 1
        %s968 = scalar_lea.sflag [#allocation6], %s967
        %s969 = sand.u32 %s187, 1
        %s970 = smul.addr %s969, 8
        %s971 = scalar_lea.vmem [#allocation5], %s970
        // Predicated region
        $region53: #{tpu_custom_call.1} parent=43 // pred_check
          %p972 = pneg %p197
        $region54: #{tpu_custom_call.1} parent=43 // pred_check_branch
          %974 = sbr.rel (%p972) target = $region56
        $region55: #{tpu_custom_call.1} parent=43 // pred_region
          %s976 = ssub.s32 128, 128
          %977 = vsyncadd %s968, %s976
          %s978 = smul.addr %s24, 128
          %s979 = scalar_lea.hbm %s6, %s978
          %s981 = sshll.u32 %s971, 4
          %s982 = int_to_ptr.vmem [resolvable:$true] %s981
          %984 = dma.vmem_to_hbm [thread:$0]  %s982, 128, %s979, %s968
        $region56: #{tpu_custom_call.1} parent=43 // pred_fallthru
          _
      $region44: #{tpu_custom_call.1} parent=5 // pred_fallthru
        _
      %p985 = scmp.le.s32.totalorder 2, %s15
      // Predicated region
      $region57: #{tpu_custom_call.1} parent=5 // pred_check
        %p986 = pneg %p985
      $region58: #{tpu_custom_call.1} parent=5 // pred_check_branch
        %988 = sbr.rel (%p986) target = $region60
      $region59: #{tpu_custom_call.1} parent=5 // pred_region
        %s989 = ssub.s32 %s15, 2
        // Predicated region
        $region61: #{tpu_custom_call.1} parent=59 // pred_check
          %p990 = pneg %p203
        $region62: #{tpu_custom_call.1} parent=59 // pred_check_branch
          %992 = sbr.rel (%p990) target = $region64
        $region63: #{tpu_custom_call.1} parent=59 // pred_region
          %s993 = sand.u32 %s188, 1
          %s994 = scalar_lea.sflag [#allocation6], %s993
          %s995 = sand.u32 %s188, 1
          %s996 = smul.addr %s995, 8
          %s997 = scalar_lea.vmem [#allocation5], %s996
          %998 = dma.done %s994, 128
        $region64: #{tpu_custom_call.1} parent=59 // pred_fallthru
          _
      $region60: #{tpu_custom_call.1} parent=5 // pred_fallthru
        _
    $region6: #{tpu_custom_call.1} parent=1 // loop_footer
      %s19 = sadd.s32 1, %s15
    $region7: #{tpu_custom_call.1} parent=1 // loop_footer_branch
      %14 = sbr.rel target = $region3
    $region8: #{tpu_custom_call.1} parent=1 // loop_exit
      _
    %999 = vsyncpa [#allocation6], 1
    %s1000 = scalar_lea.sflag [#allocation6], 1
    %1001 = vsyncpa %s1000, 1

</llo_original>
